<compile_context>
chip_gen: v6e
topology: v6e:2x2x1
jax: 0.10.0
libtpu: 0.0.40
codegen_flags: <defaults>
</compile_context>

<pallas_src>
import functools

import jax
import jax.numpy as jnp
from jax.experimental import pallas as pl
from jax.experimental.pallas import tpu as pltpu

NUM_CLASSES = 12
CLASS_WEIGHT = jnp.array(
    [50.2527, 50.4935, 4.8389, 6.368, 24.0135, 26.3811,
     9.7799, 14.6093, 16.8741, 2.7478, 49.2211, 50.2928],
    dtype=jnp.float32,
)
DICE_EPS = 1e-7  # smp DiceLoss default eps (smooth = 0.0)
_LANES = 128


def _fold_lanes(a):
    """(r, T) -> (r, 128) per-lane partial sums.

    Pure VALU adds over vreg-aligned static 128-lane slices (no relayout, no
    cross-lane XLU work in the hot loop); pairwise tree for a short dep chain.
    """
    t_len = a.shape[-1]
    parts = [a[:, k * _LANES:(k + 1) * _LANES] for k in range(t_len // _LANES)]
    while len(parts) > 1:
        nxt = [parts[i] + parts[i + 1] for i in range(0, len(parts) - 1, 2)]
        if len(parts) % 2:
            nxt.append(parts[-1])
        parts = nxt
    return parts[0]


def _loss_kernel(hw, w_ref, x_ref, t_ref,
                 inter_ref, card_ref, ysum_ref, ce_num_ref, ce_den_ref):
    s_idx = pl.program_id(1)            # pixel-split index ("parallel")
    j = pl.program_id(2)                # pixel-tile index within split ("arbitrary")
    nj = pl.num_programs(2)
    c, t_len = x_ref.shape              # (C, TILE_HW)

    @pl.when(j == 0)
    def _():
        inter_ref[...] = jnp.zeros_like(inter_ref)
        card_ref[...] = jnp.zeros_like(card_ref)
        ysum_ref[...] = jnp.zeros_like(ysum_ref)
        ce_num_ref[...] = jnp.zeros_like(ce_num_ref)
        ce_den_ref[...] = jnp.zeros_like(ce_den_ref)

    x = x_ref[...].astype(jnp.float32)        # (C, T) logits
    t = t_ref[...]                            # (1, T) int32 labels
    w = w_ref[...].astype(jnp.float32)        # (C, 1) class weights

    # pixel validity: inside the image and a legal label (-1 = ignore)
    g = s_idx * nj + j                        # global pixel-tile index
    lane = jax.lax.broadcasted_iota(jnp.int32, (1, t_len), 1)
    pix_ok = (g * t_len + lane) < hw                          # (1, T)
    tv = jnp.where(pix_ok, t, -1)
    validf = jnp.logical_and(tv >= 0, tv < c).astype(jnp.float32)

    # log-softmax over the class (sublane) axis; scrub OOB garbage before exp
    x = jnp.where(pix_ok, x, 0.0)
    m = jnp.max(x, axis=0, keepdims=True)                     # (1, T)
    z = x - m
    e = jnp.exp(z)                                            # (C, T)  one exp/logit
    s = jnp.sum(e, axis=0, keepdims=True)                     # (1, T)
    lse = jnp.log(s)

    cls = jax.lax.broadcasted_iota(jnp.int32, (c, t_len), 0)
    # tv == -1 (ignored / OOB) or tv >= C can never match cls in [0, C)
    onehot = (cls == tv).astype(jnp.float32)                  # (C, T)

    q = e * ((1.0 / s) * validf)              # valid-masked softmax probs (C, T)
    z_t = jnp.sum(onehot * z, axis=0, keepdims=True)          # (1, T)
    w_pix = jnp.sum(onehot * w, axis=0, keepdims=True)        # (1, T), 0 if ignored
    nll = lse - z_t                                           # raw NLL

    oh_f = _fold_lanes(onehot)
    inter_ref[...] += _fold_lanes(onehot * q)                 # sum_p p_t over valid
    card_ref[...] += _fold_lanes(q) + oh_f                    # sum_p (probs*valid + 1hot)
    ysum_ref[...] += oh_f
    ce_num_ref[...] += _fold_lanes(w_pix * nll)
    ce_den_ref[...] += _fold_lanes(w_pix)


def train_loss(logits, targets, *, tile_hw=16384):
    """logits: (N, C, H, W), targets: (N, H, W) int -> scalar loss."""
    n, c, h, w = logits.shape
    assert c == NUM_CLASSES
    hw = h * w

    # free reshapes only — no transpose, no pad, no dtype change in HBM
    x = logits.reshape(n, c, hw)
    t = targets.reshape(n, 1, hw).astype(jnp.int32)

    tile_hw = max(_LANES, min(tile_hw, pl.cdiv(hw, _LANES) * _LANES))
    tile_hw = (tile_hw // _LANES) * _LANES
    total_tiles = pl.cdiv(hw, tile_hw)
    # Extra parallel split of the pixel axis (multi-TC on v7x even when N==1).
    # Only used when it divides evenly so no fully-OOB tiles are ever indexed.
    splits = 2 if (total_tiles >= 2 and total_tiles % 2 == 0) else 1
    grid_j = total_tiles // splits

    out_rows = n * splits
    out_shapes = (
        jax.ShapeDtypeStruct((out_rows, c, _LANES), jnp.float32),  # intersection
        jax.ShapeDtypeStruct((out_rows, c, _LANES), jnp.float32),  # cardinality
        jax.ShapeDtypeStruct((out_rows, c, _LANES), jnp.float32),  # label counts
        jax.ShapeDtypeStruct((out_rows, 1, _LANES), jnp.float32),  # CE numerator
        jax.ShapeDtypeStruct((out_rows, 1, _LANES), jnp.float32),  # CE denominator
    )

    pix_map = lambda i, s, j: (i, 0, s * grid_j + j)
    out_map = lambda i, s, j: (i * splits + s, 0, 0)

    kernel = functools.partial(_loss_kernel, hw)
    inter_p, card_p, ysum_p, ce_num_p, ce_den_p = pl.pallas_call(
        kernel,
        out_shape=out_shapes,
        grid_spec=pltpu.PrefetchScalarGridSpec(
            num_scalar_prefetch=0,
            grid=(n, splits, grid_j),
            in_specs=[
                pl.BlockSpec((c, 1), lambda i, s, j: (0, 0)),               # weights
                pl.BlockSpec((pl.Squeezed(), c, tile_hw), pix_map),         # logits
                pl.BlockSpec((pl.Squeezed(), 1, tile_hw), pix_map),         # targets
            ],
            out_specs=[
                pl.BlockSpec((pl.Squeezed(), c, _LANES), out_map),
                pl.BlockSpec((pl.Squeezed(), c, _LANES), out_map),
                pl.BlockSpec((pl.Squeezed(), c, _LANES), out_map),
                pl.BlockSpec((pl.Squeezed(), 1, _LANES), out_map),
                pl.BlockSpec((pl.Squeezed(), 1, _LANES), out_map),
            ],
        ),
        compiler_params=pltpu.CompilerParams(
            dimension_semantics=("parallel", "parallel", "arbitrary")),
    )(CLASS_WEIGHT.reshape(c, 1), x, t)

    # tiny finalize in plain JAX (cross-lane + cross-batch reduce of partials)
    inter = jnp.sum(inter_p, axis=(0, 2))
    card = jnp.sum(card_p, axis=(0, 2))
    ysum = jnp.sum(ysum_p, axis=(0, 2))
    ce_num = jnp.sum(ce_num_p)
    ce_den = jnp.sum(ce_den_p)

    ce = ce_num / ce_den
    dice = (2.0 * inter) / jnp.maximum(card, DICE_EPS)
    dice_loss = jnp.mean((1.0 - dice) * (ysum > 0).astype(jnp.float32))
    return ce + dice_loss


def _reference_loss(logits, targets):
    # pure-JAX reference mirroring nn.CrossEntropyLoss(weight=...) + smp DiceLoss
    n, c, h, w = logits.shape
    x = jnp.transpose(logits, (0, 2, 3, 1)).reshape(-1, c).astype(jnp.float32)
    t = targets.reshape(-1)
    logp = jax.nn.log_softmax(x, axis=-1)
    nll = -jnp.take_along_axis(logp, t[:, None], axis=-1)[:, 0]
    wt = CLASS_WEIGHT[t]
    ce = jnp.sum(wt * nll) / jnp.sum(wt)
    probs = jnp.exp(logp)
    onehot = jax.nn.one_hot(t, c, dtype=jnp.float32)
    inter = jnp.sum(probs * onehot, axis=0)
    card = jnp.sum(probs + onehot, axis=0)
    ysum = jnp.sum(onehot, axis=0)
    dice = 2.0 * inter / jnp.maximum(card, DICE_EPS)
    dl = jnp.mean((1.0 - dice) * (ysum > 0).astype(jnp.float32))
    return ce + dl


if __name__ == "__main__":
    key = jax.random.PRNGKey(0)
    k1, k2 = jax.random.split(key)
    N, C, H, W = 2, NUM_CLASSES, 16, 16
    logits = jax.random.normal(k1, (N, C, H, W), dtype=jnp.float32)
    targets = jax.random.randint(k2, (N, H, W), 0, C, dtype=jnp.int32)

    loss = jax.block_until_ready(train_loss(logits, targets))
    ref = jax.block_until_ready(_reference_loss(logits, targets))
    assert jnp.allclose(loss, ref, rtol=1e-4, atol=1e-5), (loss, ref)
    print("KERNEL_OK")
</pallas_src>

<mosaic_0001>
module attributes {stable_mosaic.version = 11 : i64} {
  func.func @_loss_kernel(%arg0: i32, %arg1: i32, %arg2: i32, %arg3: memref<12x1xf32, #tpu.memory_space<vmem>>, %arg4: memref<1x12x256xf32, #tpu.memory_space<vmem>>, %arg5: memref<1x1x256xi32, #tpu.memory_space<vmem>>, %arg6: memref<1x12x128xf32, #tpu.memory_space<vmem>>, %arg7: memref<1x12x128xf32, #tpu.memory_space<vmem>>, %arg8: memref<1x12x128xf32, #tpu.memory_space<vmem>>, %arg9: memref<1x1x128xf32, #tpu.memory_space<vmem>>, %arg10: memref<1x1x128xf32, #tpu.memory_space<vmem>>) attributes {dimension_semantics = [#tpu.dimension_semantics<parallel>, #tpu.dimension_semantics<parallel>, #tpu.dimension_semantics<arbitrary>], iteration_bounds = array<i64: 2, 1, 1>, scalar_prefetch = 0 : i64, scratch_operands = 0 : i64, tpu.core_type = #tpu.core_type<tc>, window_params = [{pipeline_mode = #tpu.pipeline_mode<synchronous>, transform_indices = @transform_0, window_bounds = array<i64: 12, 1>}, {transform_indices = @transform_1, window_bounds = array<i64: 1, 12, 256>}, {transform_indices = @transform_2, window_bounds = array<i64: 1, 1, 256>}, {transform_indices = @transform_3, window_bounds = array<i64: 1, 12, 128>}, {transform_indices = @transform_4, window_bounds = array<i64: 1, 12, 128>}, {transform_indices = @transform_5, window_bounds = array<i64: 1, 12, 128>}, {transform_indices = @transform_6, window_bounds = array<i64: 1, 1, 128>}, {transform_indices = @transform_7, window_bounds = array<i64: 1, 1, 128>}]} {
    %c0_i32 = arith.constant 0 : i32
    %0 = arith.cmpi eq, %arg2, %c0_i32 : i32
    %1 = arith.extui %0 : i1 to i32
    %c0_i32_0 = arith.constant 0 : i32
    %2 = arith.cmpi ne, %1, %c0_i32_0 : i32
    scf.if %2 {
      %cst_45 = arith.constant 0.000000e+00 : f32
      %103 = vector.broadcast %cst_45 : f32 to vector<12x128xf32>
      %c0_46 = arith.constant 0 : index
      %c0_47 = arith.constant 0 : index
      %c0_48 = arith.constant 0 : index
      %104 = vector.load %arg6[%c0_46, %c0_47, %c0_48] : memref<1x12x128xf32, #tpu.memory_space<vmem>>, vector<1x12x128xf32>
      %105 = vector.shape_cast %104 : vector<1x12x128xf32> to vector<12x128xf32>
      %106 = vector.shape_cast %103 : vector<12x128xf32> to vector<1x12x128xf32>
      tpu.vector_store %arg6[%c0_46, %c0_47, %c0_48], %106 {strides = array<i32>} : memref<1x12x128xf32, #tpu.memory_space<vmem>>, vector<1x12x128xf32>,
      %cst_49 = arith.constant 0.000000e+00 : f32
      %107 = vector.broadcast %cst_49 : f32 to vector<12x128xf32>
      %c0_50 = arith.constant 0 : index
      %c0_51 = arith.constant 0 : index
      %c0_52 = arith.constant 0 : index
      %108 = vector.load %arg7[%c0_50, %c0_51, %c0_52] : memref<1x12x128xf32, #tpu.memory_space<vmem>>, vector<1x12x128xf32>
      %109 = vector.shape_cast %108 : vector<1x12x128xf32> to vector<12x128xf32>
      %110 = vector.shape_cast %107 : vector<12x128xf32> to vector<1x12x128xf32>
      tpu.vector_store %arg7[%c0_50, %c0_51, %c0_52], %110 {strides = array<i32>} : memref<1x12x128xf32, #tpu.memory_space<vmem>>, vector<1x12x128xf32>,
      %cst_53 = arith.constant 0.000000e+00 : f32
      %111 = vector.broadcast %cst_53 : f32 to vector<12x128xf32>
      %c0_54 = arith.constant 0 : index
      %c0_55 = arith.constant 0 : index
      %c0_56 = arith.constant 0 : index
      %112 = vector.load %arg8[%c0_54, %c0_55, %c0_56] : memref<1x12x128xf32, #tpu.memory_space<vmem>>, vector<1x12x128xf32>
      %113 = vector.shape_cast %112 : vector<1x12x128xf32> to vector<12x128xf32>
      %114 = vector.shape_cast %111 : vector<12x128xf32> to vector<1x12x128xf32>
      tpu.vector_store %arg8[%c0_54, %c0_55, %c0_56], %114 {strides = array<i32>} : memref<1x12x128xf32, #tpu.memory_space<vmem>>, vector<1x12x128xf32>,
      %cst_57 = arith.constant 0.000000e+00 : f32
      %115 = vector.broadcast %cst_57 : f32 to vector<1x128xf32>
      %c0_58 = arith.constant 0 : index
      %c0_59 = arith.constant 0 : index
      %c0_60 = arith.constant 0 : index
      %116 = vector.load %arg9[%c0_58, %c0_59, %c0_60] : memref<1x1x128xf32, #tpu.memory_space<vmem>>, vector<1x1x128xf32>
      %117 = vector.shape_cast %116 : vector<1x1x128xf32> to vector<1x128xf32>
      %118 = vector.shape_cast %115 : vector<1x128xf32> to vector<1x1x128xf32>
      tpu.vector_store %arg9[%c0_58, %c0_59, %c0_60], %118 {strides = array<i32>} : memref<1x1x128xf32, #tpu.memory_space<vmem>>, vector<1x1x128xf32>,
      %cst_61 = arith.constant 0.000000e+00 : f32
      %119 = vector.broadcast %cst_61 : f32 to vector<1x128xf32>
      %c0_62 = arith.constant 0 : index
      %c0_63 = arith.constant 0 : index
      %c0_64 = arith.constant 0 : index
      %120 = vector.load %arg10[%c0_62, %c0_63, %c0_64] : memref<1x1x128xf32, #tpu.memory_space<vmem>>, vector<1x1x128xf32>
      %121 = vector.shape_cast %120 : vector<1x1x128xf32> to vector<1x128xf32>
      %122 = vector.shape_cast %119 : vector<1x128xf32> to vector<1x1x128xf32>
      tpu.vector_store %arg10[%c0_62, %c0_63, %c0_64], %122 {strides = array<i32>} : memref<1x1x128xf32, #tpu.memory_space<vmem>>, vector<1x1x128xf32>,
    } else {
    }
    %c0 = arith.constant 0 : index
    %c0_1 = arith.constant 0 : index
    %c0_2 = arith.constant 0 : index
    %3 = vector.load %arg4[%c0, %c0_1, %c0_2] : memref<1x12x256xf32, #tpu.memory_space<vmem>>, vector<1x12x256xf32>
    %4 = vector.shape_cast %3 : vector<1x12x256xf32> to vector<12x256xf32>
    %c0_3 = arith.constant 0 : index
    %c0_4 = arith.constant 0 : index
    %c0_5 = arith.constant 0 : index
    %5 = vector.load %arg5[%c0_3, %c0_4, %c0_5] : memref<1x1x256xi32, #tpu.memory_space<vmem>>, vector<1x1x256xi32>
    %6 = vector.shape_cast %5 : vector<1x1x256xi32> to vector<1x256xi32>
    %c0_6 = arith.constant 0 : index
    %c0_7 = arith.constant 0 : index
    %7 = vector.load %arg3[%c0_6, %c0_7] : memref<12x1xf32, #tpu.memory_space<vmem>>, vector<12x1xf32>
    %c1_i32 = arith.constant 1 : i32
    %8 = arith.muli %arg1, %c1_i32 : i32
    %9 = arith.addi %8, %arg2 : i32
    %10 = tpu.iota {dimensions = array<i32: 1>} : vector<1x256xi32>
    %c256_i32 = arith.constant 256 : i32
    %11 = arith.muli %9, %c256_i32 : i32
    %12 = vector.broadcast %11 : i32 to vector<1x256xi32>
    %13 = arith.addi %12, %10 : vector<1x256xi32>
    %c256_i32_8 = arith.constant 256 : i32
    %14 = vector.broadcast %c256_i32_8 : i32 to vector<1x256xi32>
    %15 = arith.cmpi slt, %13, %14 : vector<1x256xi32>
    %c-1_i32 = arith.constant -1 : i32
    %16 = vector.broadcast %c-1_i32 : i32 to vector<1x256xi32>
    %17 = arith.select %15, %6, %16 : vector<1x256xi1>, vector<1x256xi32>
    %c0_i32_9 = arith.constant 0 : i32
    %18 = vector.broadcast %c0_i32_9 : i32 to vector<1x256xi32>
    %19 = arith.cmpi sge, %17, %18 : vector<1x256xi32>
    %c12_i32 = arith.constant 12 : i32
    %20 = vector.broadcast %c12_i32 : i32 to vector<1x256xi32>
    %21 = arith.cmpi slt, %17, %20 : vector<1x256xi32>
    %22 = arith.andi %19, %21 : vector<1x256xi1>
    %23 = arith.extui %22 : vector<1x256xi1> to vector<1x256xi32>
    %24 = arith.sitofp %23 : vector<1x256xi32> to vector<1x256xf32>
    %cst = arith.constant 0.000000e+00 : f32
    %25 = vector.shape_cast %15 : vector<1x256xi1> to vector<1x256xi1>
    %26 = vector.broadcast %25 : vector<1x256xi1> to vector<12x256xi1>
    %27 = vector.broadcast %cst : f32 to vector<12x256xf32>
    %28 = arith.select %26, %4, %27 : vector<12x256xi1>, vector<12x256xf32>
    %cst_10 = arith.constant dense<0xFF800000> : vector<256xf32>
    %29 = vector.multi_reduction <maximumf>, %28, %cst_10 [0] : vector<12x256xf32> to vector<256xf32>
    %30 = vector.shape_cast %29 : vector<256xf32> to vector<1x256xf32>
    %31 = vector.broadcast %30 : vector<1x256xf32> to vector<12x256xf32>
    %32 = arith.subf %28, %31 : vector<12x256xf32>
    %33 = math.exp %32 : vector<12x256xf32>
    %cst_11 = arith.constant dense<0.000000e+00> : vector<256xf32>
    %34 = vector.multi_reduction <add>, %33, %cst_11 [0] : vector<12x256xf32> to vector<256xf32>
    %35 = vector.shape_cast %34 : vector<256xf32> to vector<1x256xf32>
    %36 = math.log %35 : vector<1x256xf32>
    %37 = tpu.iota {dimensions = array<i32: 0>} : vector<12x256xi32>
    %38 = vector.broadcast %17 : vector<1x256xi32> to vector<12x256xi32>
    %39 = arith.cmpi eq, %37, %38 : vector<12x256xi32>
    %40 = arith.extui %39 : vector<12x256xi1> to vector<12x256xi32>
    %41 = arith.sitofp %40 : vector<12x256xi32> to vector<12x256xf32>
    %cst_12 = arith.constant 1.000000e+00 : f32
    %42 = vector.broadcast %cst_12 : f32 to vector<1x256xf32>
    %43 = arith.divf %42, %35 : vector<1x256xf32>
    %44 = arith.mulf %43, %24 : vector<1x256xf32>
    %45 = vector.broadcast %44 : vector<1x256xf32> to vector<12x256xf32>
    %46 = arith.mulf %33, %45 : vector<12x256xf32>
    %47 = arith.mulf %41, %32 : vector<12x256xf32>
    %cst_13 = arith.constant dense<0.000000e+00> : vector<256xf32>
    %48 = vector.multi_reduction <add>, %47, %cst_13 [0] : vector<12x256xf32> to vector<256xf32>
    %49 = vector.shape_cast %48 : vector<256xf32> to vector<1x256xf32>
    %50 = vector.broadcast %7 : vector<12x1xf32> to vector<12x256xf32>
    %51 = arith.mulf %41, %50 : vector<12x256xf32>
    %cst_14 = arith.constant dense<0.000000e+00> : vector<256xf32>
    %52 = vector.multi_reduction <add>, %51, %cst_14 [0] : vector<12x256xf32> to vector<256xf32>
    %53 = vector.shape_cast %52 : vector<256xf32> to vector<1x256xf32>
    %54 = arith.subf %36, %49 : vector<1x256xf32>
    %55 = vector.extract_strided_slice %41 {offsets = [0, 0], sizes = [12, 128], strides = [1, 1]} : vector<12x256xf32> to vector<12x128xf32>
    %56 = vector.extract_strided_slice %41 {offsets = [0, 128], sizes = [12, 128], strides = [1, 1]} : vector<12x256xf32> to vector<12x128xf32>
    %57 = arith.addf %55, %56 : vector<12x128xf32>
    %c0_15 = arith.constant 0 : index
    %c0_16 = arith.constant 0 : index
    %c0_17 = arith.constant 0 : index
    %58 = vector.load %arg6[%c0_15, %c0_16, %c0_17] : memref<1x12x128xf32, #tpu.memory_space<vmem>>, vector<1x12x128xf32>
    %59 = vector.shape_cast %58 : vector<1x12x128xf32> to vector<12x128xf32>
    %60 = arith.mulf %41, %46 : vector<12x256xf32>
    %61 = vector.extract_strided_slice %60 {offsets = [0, 0], sizes = [12, 128], strides = [1, 1]} : vector<12x256xf32> to vector<12x128xf32>
    %62 = vector.extract_strided_slice %60 {offsets = [0, 128], sizes = [12, 128], strides = [1, 1]} : vector<12x256xf32> to vector<12x128xf32>
    %63 = arith.addf %61, %62 : vector<12x128xf32>
    %64 = arith.addf %59, %63 : vector<12x128xf32>
    %c0_18 = arith.constant 0 : index
    %c0_19 = arith.constant 0 : index
    %c0_20 = arith.constant 0 : index
    %65 = vector.load %arg6[%c0_18, %c0_19, %c0_20] : memref<1x12x128xf32, #tpu.memory_space<vmem>>, vector<1x12x128xf32>
    %66 = vector.shape_cast %65 : vector<1x12x128xf32> to vector<12x128xf32>
    %67 = vector.shape_cast %64 : vector<12x128xf32> to vector<1x12x128xf32>
    tpu.vector_store %arg6[%c0_18, %c0_19, %c0_20], %67 {strides = array<i32>} : memref<1x12x128xf32, #tpu.memory_space<vmem>>, vector<1x12x128xf32>,
    %c0_21 = arith.constant 0 : index
    %c0_22 = arith.constant 0 : index
    %c0_23 = arith.constant 0 : index
    %68 = vector.load %arg7[%c0_21, %c0_22, %c0_23] : memref<1x12x128xf32, #tpu.memory_space<vmem>>, vector<1x12x128xf32>
    %69 = vector.shape_cast %68 : vector<1x12x128xf32> to vector<12x128xf32>
    %70 = vector.extract_strided_slice %46 {offsets = [0, 0], sizes = [12, 128], strides = [1, 1]} : vector<12x256xf32> to vector<12x128xf32>
    %71 = vector.extract_strided_slice %46 {offsets = [0, 128], sizes = [12, 128], strides = [1, 1]} : vector<12x256xf32> to vector<12x128xf32>
    %72 = arith.addf %70, %71 : vector<12x128xf32>
    %73 = arith.addf %72, %57 : vector<12x128xf32>
    %74 = arith.addf %69, %73 : vector<12x128xf32>
    %c0_24 = arith.constant 0 : index
    %c0_25 = arith.constant 0 : index
    %c0_26 = arith.constant 0 : index
    %75 = vector.load %arg7[%c0_24, %c0_25, %c0_26] : memref<1x12x128xf32, #tpu.memory_space<vmem>>, vector<1x12x128xf32>
    %76 = vector.shape_cast %75 : vector<1x12x128xf32> to vector<12x128xf32>
    %77 = vector.shape_cast %74 : vector<12x128xf32> to vector<1x12x128xf32>
    tpu.vector_store %arg7[%c0_24, %c0_25, %c0_26], %77 {strides = array<i32>} : memref<1x12x128xf32, #tpu.memory_space<vmem>>, vector<1x12x128xf32>,
    %c0_27 = arith.constant 0 : index
    %c0_28 = arith.constant 0 : index
    %c0_29 = arith.constant 0 : index
    %78 = vector.load %arg8[%c0_27, %c0_28, %c0_29] : memref<1x12x128xf32, #tpu.memory_space<vmem>>, vector<1x12x128xf32>
    %79 = vector.shape_cast %78 : vector<1x12x128xf32> to vector<12x128xf32>
    %80 = arith.addf %79, %57 : vector<12x128xf32>
    %c0_30 = arith.constant 0 : index
    %c0_31 = arith.constant 0 : index
    %c0_32 = arith.constant 0 : index
    %81 = vector.load %arg8[%c0_30, %c0_31, %c0_32] : memref<1x12x128xf32, #tpu.memory_space<vmem>>, vector<1x12x128xf32>
    %82 = vector.shape_cast %81 : vector<1x12x128xf32> to vector<12x128xf32>
    %83 = vector.shape_cast %80 : vector<12x128xf32> to vector<1x12x128xf32>
    tpu.vector_store %arg8[%c0_30, %c0_31, %c0_32], %83 {strides = array<i32>} : memref<1x12x128xf32, #tpu.memory_space<vmem>>, vector<1x12x128xf32>,
    %c0_33 = arith.constant 0 : index
    %c0_34 = arith.constant 0 : index
    %c0_35 = arith.constant 0 : index
    %84 = vector.load %arg9[%c0_33, %c0_34, %c0_35] : memref<1x1x128xf32, #tpu.memory_space<vmem>>, vector<1x1x128xf32>
    %85 = vector.shape_cast %84 : vector<1x1x128xf32> to vector<1x128xf32>
    %86 = arith.mulf %53, %54 : vector<1x256xf32>
    %87 = vector.extract_strided_slice %86 {offsets = [0, 0], sizes = [1, 128], strides = [1, 1]} : vector<1x256xf32> to vector<1x128xf32>
    %88 = vector.extract_strided_slice %86 {offsets = [0, 128], sizes = [1, 128], strides = [1, 1]} : vector<1x256xf32> to vector<1x128xf32>
    %89 = arith.addf %87, %88 : vector<1x128xf32>
    %90 = arith.addf %85, %89 : vector<1x128xf32>
    %c0_36 = arith.constant 0 : index
    %c0_37 = arith.constant 0 : index
    %c0_38 = arith.constant 0 : index
    %91 = vector.load %arg9[%c0_36, %c0_37, %c0_38] : memref<1x1x128xf32, #tpu.memory_space<vmem>>, vector<1x1x128xf32>
    %92 = vector.shape_cast %91 : vector<1x1x128xf32> to vector<1x128xf32>
    %93 = vector.shape_cast %90 : vector<1x128xf32> to vector<1x1x128xf32>
    tpu.vector_store %arg9[%c0_36, %c0_37, %c0_38], %93 {strides = array<i32>} : memref<1x1x128xf32, #tpu.memory_space<vmem>>, vector<1x1x128xf32>,
    %c0_39 = arith.constant 0 : index
    %c0_40 = arith.constant 0 : index
    %c0_41 = arith.constant 0 : index
    %94 = vector.load %arg10[%c0_39, %c0_40, %c0_41] : memref<1x1x128xf32, #tpu.memory_space<vmem>>, vector<1x1x128xf32>
    %95 = vector.shape_cast %94 : vector<1x1x128xf32> to vector<1x128xf32>
    %96 = vector.extract_strided_slice %53 {offsets = [0, 0], sizes = [1, 128], strides = [1, 1]} : vector<1x256xf32> to vector<1x128xf32>
    %97 = vector.extract_strided_slice %53 {offsets = [0, 128], sizes = [1, 128], strides = [1, 1]} : vector<1x256xf32> to vector<1x128xf32>
    %98 = arith.addf %96, %97 : vector<1x128xf32>
    %99 = arith.addf %95, %98 : vector<1x128xf32>
    %c0_42 = arith.constant 0 : index
    %c0_43 = arith.constant 0 : index
    %c0_44 = arith.constant 0 : index
    %100 = vector.load %arg10[%c0_42, %c0_43, %c0_44] : memref<1x1x128xf32, #tpu.memory_space<vmem>>, vector<1x1x128xf32>
    %101 = vector.shape_cast %100 : vector<1x1x128xf32> to vector<1x128xf32>
    %102 = vector.shape_cast %99 : vector<1x128xf32> to vector<1x1x128xf32>
    tpu.vector_store %arg10[%c0_42, %c0_43, %c0_44], %102 {strides = array<i32>} : memref<1x1x128xf32, #tpu.memory_space<vmem>>, vector<1x1x128xf32>,
    return
  }
  func.func @transform_0(%arg0: i32, %arg1: i32, %arg2: i32) -> (i32, i32) {
    %c0_i32 = arith.constant 0 : i32
    %c0_i32_0 = arith.constant 0 : i32
    %c0_i32_1 = arith.constant 0 : i32
    return %c0_i32, %c0_i32_0 : i32, i32
  }
  func.func @transform_1(%arg0: i32, %arg1: i32, %arg2: i32) -> (i32, i32, i32) {
    %c1_i32 = arith.constant 1 : i32
    %0 = arith.muli %arg1, %c1_i32 : i32
    %1 = arith.addi %0, %arg2 : i32
    %c0_i32 = arith.constant 0 : i32
    %c0_i32_0 = arith.constant 0 : i32
    return %arg0, %c0_i32, %1 : i32, i32, i32
  }
  func.func @transform_2(%arg0: i32, %arg1: i32, %arg2: i32) -> (i32, i32, i32) {
    %c1_i32 = arith.constant 1 : i32
    %0 = arith.muli %arg1, %c1_i32 : i32
    %1 = arith.addi %0, %arg2 : i32
    %c0_i32 = arith.constant 0 : i32
    %c0_i32_0 = arith.constant 0 : i32
    return %arg0, %c0_i32, %1 : i32, i32, i32
  }
  func.func @transform_3(%arg0: i32, %arg1: i32, %arg2: i32) -> (i32, i32, i32) {
    %c1_i32 = arith.constant 1 : i32
    %0 = arith.muli %arg0, %c1_i32 : i32
    %1 = arith.addi %0, %arg1 : i32
    %c0_i32 = arith.constant 0 : i32
    %c0_i32_0 = arith.constant 0 : i32
    %c0_i32_1 = arith.constant 0 : i32
    return %1, %c0_i32, %c0_i32_0 : i32, i32, i32
  }
  func.func @transform_4(%arg0: i32, %arg1: i32, %arg2: i32) -> (i32, i32, i32) {
    %c1_i32 = arith.constant 1 : i32
    %0 = arith.muli %arg0, %c1_i32 : i32
    %1 = arith.addi %0, %arg1 : i32
    %c0_i32 = arith.constant 0 : i32
    %c0_i32_0 = arith.constant 0 : i32
    %c0_i32_1 = arith.constant 0 : i32
    return %1, %c0_i32, %c0_i32_0 : i32, i32, i32
  }
  func.func @transform_5(%arg0: i32, %arg1: i32, %arg2: i32) -> (i32, i32, i32) {
    %c1_i32 = arith.constant 1 : i32
    %0 = arith.muli %arg0, %c1_i32 : i32
    %1 = arith.addi %0, %arg1 : i32
    %c0_i32 = arith.constant 0 : i32
    %c0_i32_0 = arith.constant 0 : i32
    %c0_i32_1 = arith.constant 0 : i32
    return %1, %c0_i32, %c0_i32_0 : i32, i32, i32
  }
  func.func @transform_6(%arg0: i32, %arg1: i32, %arg2: i32) -> (i32, i32, i32) {
    %c1_i32 = arith.constant 1 : i32
    %0 = arith.muli %arg0, %c1_i32 : i32
    %1 = arith.addi %0, %arg1 : i32
    %c0_i32 = arith.constant 0 : i32
    %c0_i32_0 = arith.constant 0 : i32
    %c0_i32_1 = arith.constant 0 : i32
    return %1, %c0_i32, %c0_i32_0 : i32, i32, i32
  }
  func.func @transform_7(%arg0: i32, %arg1: i32, %arg2: i32) -> (i32, i32, i32) {
    %c1_i32 = arith.constant 1 : i32
    %0 = arith.muli %arg0, %c1_i32 : i32
    %1 = arith.addi %0, %arg1 : i32
    %c0_i32 = arith.constant 0 : i32
    %c0_i32_0 = arith.constant 0 : i32
    %c0_i32_1 = arith.constant 0 : i32
    return %1, %c0_i32, %c0_i32_0 : i32, i32, i32
  }
}

</mosaic_0001>

<llo_original>
// kernel: tpu_custom_call.1
$region0: #{tpu_custom_call.1}
  #allocation0 [shape = 'u32[]', space=smem, size = 0x4, offset = 0x4, fixed_abs, tag = 'smem constant byte address 0x4 - core index']
  #allocation1 [shape = 'u32[144,128]{1,0:T(1,128)}', space=vmem, size = 0x12000, scoped, tag = 'internal scratch']
  %s0 = inlined_call_operand.vmem [shape: f32[12,1], index: 0, kind: input, shape index: {}]
  %s1 = inlined_call_operand.vmem [shape: f32[2,12,256], index: 1, kind: input, shape index: {}]
  %s2 = inlined_call_operand.vmem [shape: s32[2,1,256], index: 2, kind: input, shape index: {}]
  %s3 = inlined_call_operand.vmem [shape: f32[2,12,128], index: 3, kind: output, shape index: {0}]
  %s4 = inlined_call_operand.vmem [shape: f32[2,12,128], index: 4, kind: output, shape index: {1}]
  %s5 = inlined_call_operand.vmem [shape: f32[2,12,128], index: 5, kind: output, shape index: {2}]
  %s6 = inlined_call_operand.hbm [shape: f32[2,1,128], index: 6, kind: output, shape index: {3}]
  %s7 = inlined_call_operand.hbm [shape: f32[2,1,128], index: 7, kind: output, shape index: {4}]
  %8 = xla_tuple %s3, %s4, %s5, %s6, %s7
  %s9 = sld [smem:[#allocation0]]
  $region81: #{tpu_custom_call.1} parent=0
    _
  %s11 = ssub.s32 1, %s9
  %s12 = scalar_select 0, %s11, %s9
  $region1: #{tpu_custom_call.1} parent=0
    #allocation2 [shape = 'u8[1024]{0}', space=vmem, size = 0x400, scoped, tag = 'output window, operand 3']
    #allocation3 [shape = 's32[2]{0}', space=sflag, size = 0x8, scoped, tag = 'scoped memory for tpu_custom_call.1']
    #allocation4 [shape = 'u8[1024]{0}', space=vmem, size = 0x400, scoped, tag = 'output window, operand 4']
    #allocation5 [shape = 's32[2]{0}', space=sflag, size = 0x8, scoped, tag = 'scoped memory for tpu_custom_call.1']
    %13 = vsyncpa [#allocation3], 0
    %s14 = scalar_lea.sflag [#allocation3], 1
    %15 = vsyncpa %s14, 0
    %16 = vsyncpa [#allocation5], 0
    %s17 = scalar_lea.sflag [#allocation5], 1
    %18 = vsyncpa %s17, 0
    loop: start=0, step=1, limit=4
    $region2: #{tpu_custom_call.1} parent=1 // loop_pre_header
      _
    $region3: #{tpu_custom_call.1} parent=1 // loop_header
      %s20 = sphi 0, %s24
      %p21 = scmp.ge.s32.totalorder %s20, 4
      %s27 = sphi 0, %s46
      %s28 = sphi 0, %s42
      %s29 = sphi 0, %s38
      %s30 = sphi 0, %s27
      %s31 = sphi 0, %s28
      %s32 = sphi 0, %s29
      %s33 = sphi 0, %s30
      %s34 = sphi 0, %s31
      %s35 = sphi 0, %s32
      %s47 = sphi 0, %s47
      %s49 = sphi 0, %s47
      %s50 = sphi 0, %s49
      %s64 = sphi 0, %s50
      %s74 = sphi 0, %s76
      %s77 = sphi 0, %s74
      %s78 = sphi 0, %s77
      %s94 = sphi 0, %s78
      %s104 = sphi 0, %s106
      %s107 = sphi 0, %s104
      %s108 = sphi 0, %s107
      %s124 = sphi 0, %s108
      %s132 = sphi 0, %s134
      %s135 = sphi 0, %s132
      %s136 = sphi 0, %s135
      %s152 = sphi 0, %s136
      %s160 = sphi 0, %s162
      %s163 = sphi 0, %s160
      %s164 = sphi 0, %s163
      %s180 = sphi 0, %s164
      %s188 = sphi 0, %s190
      %s191 = sphi 0, %s188
      %s192 = sphi 0, %s191
      %s208 = sphi 0, %s192
      %s216 = sphi 0, %s218
      %s219 = sphi 0, %s216
      %s220 = sphi 0, %s219
      %s236 = sphi 0, %s220
      %s244 = sphi 0, %s246
      %s247 = sphi 0, %s244
      %s248 = sphi 0, %s247
      %s264 = sphi 0, %s248
    $region4: #{tpu_custom_call.1} parent=1 // loop_header_branch
      %23 = sbr.rel (%p21) target = $region8
    $region5: #{tpu_custom_call.1} parent=1 // loop_body
      %s25 = ssub.s32 %s20, 1
      %s26 = ssub.s32 %s20, 2
      %s36 = sadd.s32 1, %s29
      %p37 = scmp.ge.s32.totalorder %s36, 1
      %s38 = scalar_select %p37, 0, %s36
      %s39 = sadd.s32 1, %s28
      %s40 = scalar_select %p37, %s39, %s28
      %p41 = scmp.ge.s32.totalorder %s40, 1
      %s42 = scalar_select %p41, 0, %s40
      %s43 = sadd.s32 1, %s27
      %s44 = scalar_select %p41, %s43, %s27
      %p45 = scmp.ge.s32.totalorder %s44, 2
      %s46 = scalar_select %p45, 0, %s44
      %s48 = sadd.s32 %s47, 1
      %p51 = scmp.eq.s32.totalorder %s20, 1
      %p52 = scmp.ne.s32.totalorder %s47, %s49
      %p53 = scmp.eq.s32.totalorder %s20, 0
      %p54 = por %p52, %p53
      %p55 = scmp.ne.s32.totalorder %s47, %s49
      %p56 = scmp.eq.s32.totalorder %s25, 1
      %p57 = por %p55, %p56
      %p58 = scmp.ne.s32.totalorder %s49, %s50
      %p59 = scmp.eq.s32.totalorder %s25, 0
      %p60 = por %p58, %p59
      %p61 = scmp.ne.s32.totalorder %s49, %s50
      %p62 = scmp.eq.s32.totalorder %s26, 1
      %p63 = por %p61, %p62
      %p65 = scmp.ne.s32.totalorder %s50, %s64
      %p66 = scmp.eq.s32.totalorder %s26, 0
      %p67 = por %p65, %p66
      %s68 = sadd.s32 %s28, %s29
      %s69 = sadd.s32 %s42, %s38
      %s70 = ssub.s32 %s27, %s46
      %s71 = ssub.s32 %s68, %s69
      %s72 = sor.u32 %s70, %s71
      %p73 = scmp.eq.s32.totalorder %s72, 0
      %s75 = sadd.s32 %s74, 1
      %s76 = scalar_select %p73, %s74, %s75
      %p79 = pneg %p73
      %p80 = scmp.eq.s32.totalorder %s20, 1
      %p81 = por %p79, %p80
      %p82 = scmp.ne.s32.totalorder %s74, %s77
      %p83 = scmp.eq.s32.totalorder %s20, 0
      %p84 = por %p82, %p83
      %p85 = scmp.ne.s32.totalorder %s74, %s77
      %p86 = scmp.eq.s32.totalorder %s25, 1
      %p87 = por %p85, %p86
      %p88 = scmp.ne.s32.totalorder %s77, %s78
      %p89 = scmp.eq.s32.totalorder %s25, 0
      %p90 = por %p88, %p89
      %p91 = scmp.ne.s32.totalorder %s77, %s78
      %p92 = scmp.eq.s32.totalorder %s26, 1
      %p93 = por %p91, %p92
      %p95 = scmp.ne.s32.totalorder %s78, %s94
      %p96 = scmp.eq.s32.totalorder %s26, 0
      %p97 = por %p95, %p96
      %s98 = sadd.s32 %s28, %s29
      %s99 = sadd.s32 %s42, %s38
      %s100 = ssub.s32 %s27, %s46
      %s101 = ssub.s32 %s98, %s99
      %s102 = sor.u32 %s100, %s101
      %p103 = scmp.eq.s32.totalorder %s102, 0
      %s105 = sadd.s32 %s104, 1
      %s106 = scalar_select %p103, %s104, %s105
      %p109 = pneg %p103
      %p110 = scmp.eq.s32.totalorder %s20, 1
      %p111 = por %p109, %p110
      %p112 = scmp.ne.s32.totalorder %s104, %s107
      %p113 = scmp.eq.s32.totalorder %s20, 0
      %p114 = por %p112, %p113
      %p115 = scmp.ne.s32.totalorder %s104, %s107
      %p116 = scmp.eq.s32.totalorder %s25, 1
      %p117 = por %p115, %p116
      %p118 = scmp.ne.s32.totalorder %s107, %s108
      %p119 = scmp.eq.s32.totalorder %s25, 0
      %p120 = por %p118, %p119
      %p121 = scmp.ne.s32.totalorder %s107, %s108
      %p122 = scmp.eq.s32.totalorder %s26, 1
      %p123 = por %p121, %p122
      %p125 = scmp.ne.s32.totalorder %s108, %s124
      %p126 = scmp.eq.s32.totalorder %s26, 0
      %p127 = por %p125, %p126
      %s128 = sadd.s32 %s27, %s28
      %s129 = sadd.s32 %s46, %s42
      %s130 = ssub.s32 %s128, %s129
      %p131 = scmp.eq.s32.totalorder %s130, 0
      %s133 = sadd.s32 %s132, 1
      %s134 = scalar_select %p131, %s132, %s133
      %p137 = pneg %p131
      %p138 = scmp.eq.s32.totalorder %s20, 1
      %p139 = por %p137, %p138
      %p140 = scmp.ne.s32.totalorder %s132, %s135
      %p141 = scmp.eq.s32.totalorder %s20, 0
      %p142 = por %p140, %p141
      %p143 = scmp.ne.s32.totalorder %s132, %s135
      %p144 = scmp.eq.s32.totalorder %s25, 1
      %p145 = por %p143, %p144
      %p146 = scmp.ne.s32.totalorder %s135, %s136
      %p147 = scmp.eq.s32.totalorder %s25, 0
      %p148 = por %p146, %p147
      %p149 = scmp.ne.s32.totalorder %s135, %s136
      %p150 = scmp.eq.s32.totalorder %s26, 1
      %p151 = por %p149, %p150
      %p153 = scmp.ne.s32.totalorder %s136, %s152
      %p154 = scmp.eq.s32.totalorder %s26, 0
      %p155 = por %p153, %p154
      %s156 = sadd.s32 %s27, %s28
      %s157 = sadd.s32 %s46, %s42
      %s158 = ssub.s32 %s156, %s157
      %p159 = scmp.eq.s32.totalorder %s158, 0
      %s161 = sadd.s32 %s160, 1
      %s162 = scalar_select %p159, %s160, %s161
      %p165 = pneg %p159
      %p166 = scmp.eq.s32.totalorder %s20, 1
      %p167 = por %p165, %p166
      %p168 = scmp.ne.s32.totalorder %s160, %s163
      %p169 = scmp.eq.s32.totalorder %s20, 0
      %p170 = por %p168, %p169
      %p171 = scmp.ne.s32.totalorder %s160, %s163
      %p172 = scmp.eq.s32.totalorder %s25, 1
      %p173 = por %p171, %p172
      %p174 = scmp.ne.s32.totalorder %s163, %s164
      %p175 = scmp.eq.s32.totalorder %s25, 0
      %p176 = por %p174, %p175
      %p177 = scmp.ne.s32.totalorder %s163, %s164
      %p178 = scmp.eq.s32.totalorder %s26, 1
      %p179 = por %p177, %p178
      %p181 = scmp.ne.s32.totalorder %s164, %s180
      %p182 = scmp.eq.s32.totalorder %s26, 0
      %p183 = por %p181, %p182
      %s184 = sadd.s32 %s27, %s28
      %s185 = sadd.s32 %s46, %s42
      %s186 = ssub.s32 %s184, %s185
      %p187 = scmp.eq.s32.totalorder %s186, 0
      %s189 = sadd.s32 %s188, 1
      %s190 = scalar_select %p187, %s188, %s189
      %p193 = pneg %p187
      %p194 = scmp.eq.s32.totalorder %s20, 1
      %p195 = por %p193, %p194
      %p196 = scmp.ne.s32.totalorder %s188, %s191
      %p197 = scmp.eq.s32.totalorder %s20, 0
      %p198 = por %p196, %p197
      %p199 = scmp.ne.s32.totalorder %s188, %s191
      %p200 = scmp.eq.s32.totalorder %s25, 1
      %p201 = por %p199, %p200
      %p202 = scmp.ne.s32.totalorder %s191, %s192
      %p203 = scmp.eq.s32.totalorder %s25, 0
      %p204 = por %p202, %p203
      %p205 = scmp.ne.s32.totalorder %s191, %s192
      %p206 = scmp.eq.s32.totalorder %s26, 1
      %p207 = por %p205, %p206
      %p209 = scmp.ne.s32.totalorder %s192, %s208
      %p210 = scmp.eq.s32.totalorder %s26, 0
      %p211 = por %p209, %p210
      %s212 = sadd.s32 %s27, %s28
      %s213 = sadd.s32 %s46, %s42
      %s214 = ssub.s32 %s212, %s213
      %p215 = scmp.eq.s32.totalorder %s214, 0
      %s217 = sadd.s32 %s216, 1
      %s218 = scalar_select %p215, %s216, %s217
      %p221 = pneg %p215
      %p222 = scmp.eq.s32.totalorder %s20, 1
      %p223 = por %p221, %p222
      %p224 = scmp.ne.s32.totalorder %s216, %s219
      %p225 = scmp.eq.s32.totalorder %s20, 0
      %p226 = por %p224, %p225
      %p227 = scmp.ne.s32.totalorder %s216, %s219
      %p228 = scmp.eq.s32.totalorder %s25, 1
      %p229 = por %p227, %p228
      %p230 = scmp.ne.s32.totalorder %s219, %s220
      %p231 = scmp.eq.s32.totalorder %s25, 0
      %p232 = por %p230, %p231
      %p233 = scmp.ne.s32.totalorder %s219, %s220
      %p234 = scmp.eq.s32.totalorder %s26, 1
      %p235 = por %p233, %p234
      %p237 = scmp.ne.s32.totalorder %s220, %s236
      %p238 = scmp.eq.s32.totalorder %s26, 0
      %p239 = por %p237, %p238
      %s240 = sadd.s32 %s27, %s28
      %s241 = sadd.s32 %s46, %s42
      %s242 = ssub.s32 %s240, %s241
      %p243 = scmp.eq.s32.totalorder %s242, 0
      %s245 = sadd.s32 %s244, 1
      %s246 = scalar_select %p243, %s244, %s245
      %p249 = pneg %p243
      %p250 = scmp.eq.s32.totalorder %s20, 1
      %p251 = por %p249, %p250
      %p252 = scmp.ne.s32.totalorder %s244, %s247
      %p253 = scmp.eq.s32.totalorder %s20, 0
      %p254 = por %p252, %p253
      %p255 = scmp.ne.s32.totalorder %s244, %s247
      %p256 = scmp.eq.s32.totalorder %s25, 1
      %p257 = por %p255, %p256
      %p258 = scmp.ne.s32.totalorder %s247, %s248
      %p259 = scmp.eq.s32.totalorder %s25, 0
      %p260 = por %p258, %p259
      %p261 = scmp.ne.s32.totalorder %s247, %s248
      %p262 = scmp.eq.s32.totalorder %s26, 1
      %p263 = por %p261, %p262
      %p265 = scmp.ne.s32.totalorder %s248, %s264
      %p266 = scmp.eq.s32.totalorder %s26, 0
      %p267 = por %p265, %p266
      %p268 = scmp.le.s32.totalorder 1, %s20
      %p269 = scmp.lt.s32.totalorder %s20, 3
      %p270 = pnand %p268, %p269
      %p271 = pneg %p270
      // Predicated region
      $region9: #{tpu_custom_call.1} parent=5 // pred_check
        _
      $region10: #{tpu_custom_call.1} parent=5 // pred_check_branch
        %273 = sbr.rel (%p270) target = $region12
      $region11: #{tpu_custom_call.1} parent=5 // pred_region
        %s274 = ssub.s32 %s20, 1
        // Predicated region
        $region13: #{tpu_custom_call.1} parent=11 // pred_check
          %p275 = pneg %p60
        $region14: #{tpu_custom_call.1} parent=11 // pred_check_branch
          %277 = sbr.rel (%p275) target = $region16
        $region15: #{tpu_custom_call.1} parent=11 // pred_region
          _
        $region16: #{tpu_custom_call.1} parent=11 // pred_fallthru
          _
      $region12: #{tpu_custom_call.1} parent=5 // pred_fallthru
        _
      %p278 = scmp.lt.s32.totalorder %s20, 2
      // Predicated region
      $region17: #{tpu_custom_call.1} parent=5 // pred_check
        %p279 = pneg %p278
      $region18: #{tpu_custom_call.1} parent=5 // pred_check_branch
        %281 = sbr.rel (%p279) target = $region20
      $region19: #{tpu_custom_call.1} parent=5 // pred_region
        // Predicated region
        $region21: #{tpu_custom_call.1} parent=19 // pred_check
          %p282 = pneg %p84
        $region22: #{tpu_custom_call.1} parent=19 // pred_check_branch
          %284 = sbr.rel (%p282) target = $region24
        $region23: #{tpu_custom_call.1} parent=19 // pred_region
          %s285 = sadd.s32 %s28, %s29
          %s286 = smul.u32 2, %s285
          %p287 = scmp.lt.s32.totalorder %s27, 1
          %s288 = scalar_select %p287, %s27, 1
          %p289 = scmp.lt.s32.totalorder %s286, 1
          %s290 = scalar_select %p289, %s286, 1
          %s291 = smul.addr %s288, 4
          %s292 = sadd.s32 %s290, %s291
          %s293 = smul.addr %s292, 8
          %s294 = scalar_lea.vmem %s1, %s293
          %s295 = sadd.s32 %s28, %s29
          %s296 = smul.u32 2, %s295
        $region24: #{tpu_custom_call.1} parent=19 // pred_fallthru
          _
        // Predicated region
        $region25: #{tpu_custom_call.1} parent=19 // pred_check
          %p297 = pneg %p114
        $region26: #{tpu_custom_call.1} parent=19 // pred_check_branch
          %299 = sbr.rel (%p297) target = $region28
        $region27: #{tpu_custom_call.1} parent=19 // pred_region
          %s300 = sadd.s32 %s28, %s29
          %s301 = smul.u32 2, %s300
          %p302 = scmp.lt.s32.totalorder %s27, 1
          %s303 = scalar_select %p302, %s27, 1
          %p304 = scmp.lt.s32.totalorder %s301, 1
          %s305 = scalar_select %p304, %s301, 1
          %s306 = smul.addr %s303, 2
          %s307 = sadd.s32 %s305, %s306
          %s308 = scalar_lea.vmem %s2, %s307
          %s309 = sadd.s32 %s28, %s29
          %s310 = smul.u32 2, %s309
        $region28: #{tpu_custom_call.1} parent=19 // pred_fallthru
          _
      $region20: #{tpu_custom_call.1} parent=5 // pred_fallthru
        _
      %p311 = scmp.le.s32.totalorder 1, %s20
      %p312 = scmp.lt.s32.totalorder %s20, 3
      %p313 = pnand %p311, %p312
      %p314 = pneg %p313
      // Predicated region
      $region29: #{tpu_custom_call.1} parent=5 // pred_check
        _
      $region30: #{tpu_custom_call.1} parent=5 // pred_check_branch
        %316 = sbr.rel (%p313) target = $region32
      $region31: #{tpu_custom_call.1} parent=5 // pred_region
        %s317 = ssub.s32 %s20, 1
        %p318 = pneg %p60
        %p319 = pneg %p57
        %s320 = sadd.s32 %s31, %s32
        %s321 = smul.u32 2, %s320
        %p322 = scmp.lt.s32.totalorder %s30, 1
        %s323 = scalar_select %p322, %s30, 1
        %p324 = scmp.lt.s32.totalorder %s321, 1
        %s325 = scalar_select %p324, %s321, 1
        %s326 = smul.addr %s323, 4
        %s327 = sadd.s32 %s325, %s326
        %s328 = smul.addr %s327, 8
        %s329 = scalar_lea.vmem %s1, %s328
        %p330 = pneg %p90
        %p331 = pneg %p87
        %s332 = sadd.s32 %s31, %s32
        %s333 = smul.u32 2, %s332
        %p334 = scmp.lt.s32.totalorder %s30, 1
        %s335 = scalar_select %p334, %s30, 1
        %p336 = scmp.lt.s32.totalorder %s333, 1
        %s337 = scalar_select %p336, %s333, 1
        %s338 = smul.addr %s335, 2
        %s339 = sadd.s32 %s337, %s338
        %s340 = scalar_lea.vmem %s2, %s339
        %p341 = pneg %p120
        %p342 = pneg %p117
        %p343 = pneg %p148
        %p344 = pneg %p145
        %s345 = sadd.s32 %s30, %s31
        %p346 = scmp.lt.s32.totalorder %s345, 1
        %s347 = scalar_select %p346, %s345, 1
        %s348 = smul.addr %s347, 2
        %s349 = smul.addr %s348, 8
        %s350 = scalar_lea.vmem %s3, %s349
        %p351 = pneg %p176
        %p352 = pneg %p173
        %s353 = sadd.s32 %s30, %s31
        %p354 = scmp.lt.s32.totalorder %s353, 1
        %s355 = scalar_select %p354, %s353, 1
        %s356 = smul.addr %s355, 2
        %s357 = smul.addr %s356, 8
        %s358 = scalar_lea.vmem %s4, %s357
        %p359 = pneg %p204
        %p360 = pneg %p201
        %s361 = sadd.s32 %s30, %s31
        %p362 = scmp.lt.s32.totalorder %s361, 1
        %s363 = scalar_select %p362, %s361, 1
        %s364 = smul.addr %s363, 2
        %s365 = smul.addr %s364, 8
        %s366 = scalar_lea.vmem %s5, %s365
        %p367 = pneg %p232
        %p368 = pneg %p229
        %s369 = sand.u32 %s219, 1
        %s370 = scalar_lea.sflag [#allocation3], %s369
        %s371 = sand.u32 %s219, 1
        %s372 = scalar_lea.vmem [#allocation2], %s371
        %p373 = pneg %p260
        %p374 = pneg %p257
        %s375 = sand.u32 %s247, 1
        %s376 = scalar_lea.sflag [#allocation5], %s375
        %s377 = sand.u32 %s247, 1
        %s378 = scalar_lea.vmem [#allocation4], %s377
        %s379 = sadd.s32 %s31, %s32
        %s380 = smul.u32 2, %s379
        %p381 = scmp.lt.s32.totalorder %s30, 1
        %s382 = scalar_select %p381, %s30, 1
        %p383 = scmp.lt.s32.totalorder %s380, 1
        %s384 = scalar_select %p383, %s380, 1
        %s385 = smul.addr %s382, 4
        %s386 = sadd.s32 %s384, %s385
        %s387 = smul.addr %s386, 8
        %s388 = scalar_lea.vmem %s1, %s387
        %s389 = sadd.s32 %s31, %s32
        %s390 = smul.u32 2, %s389
        %s391 = sadd.s32 %s31, %s32
        %s392 = smul.u32 2, %s391
        %p393 = scmp.lt.s32.totalorder %s30, 1
        %s394 = scalar_select %p393, %s30, 1
        %p395 = scmp.lt.s32.totalorder %s392, 1
        %s396 = scalar_select %p395, %s392, 1
        %s397 = smul.addr %s394, 2
        %s398 = sadd.s32 %s396, %s397
        %s399 = scalar_lea.vmem %s2, %s398
        %s400 = sadd.s32 %s31, %s32
        %s401 = smul.u32 2, %s400
        %s402 = sadd.s32 %s30, %s31
        %p403 = scmp.lt.s32.totalorder %s402, 1
        %s404 = scalar_select %p403, %s402, 1
        %s405 = smul.addr %s404, 2
        %s406 = smul.addr %s405, 8
        %s407 = scalar_lea.vmem %s3, %s406
        %s408 = sadd.s32 %s30, %s31
        %s409 = sadd.s32 %s30, %s31
        %p410 = scmp.lt.s32.totalorder %s409, 1
        %s411 = scalar_select %p410, %s409, 1
        %s412 = smul.addr %s411, 2
        %s413 = smul.addr %s412, 8
        %s414 = scalar_lea.vmem %s4, %s413
        %s415 = sadd.s32 %s30, %s31
        %s416 = sadd.s32 %s30, %s31
        %p417 = scmp.lt.s32.totalorder %s416, 1
        %s418 = scalar_select %p417, %s416, 1
        %s419 = smul.addr %s418, 2
        %s420 = smul.addr %s419, 8
        %s421 = scalar_lea.vmem %s5, %s420
        %s422 = sadd.s32 %s30, %s31
        %s423 = sadd.s32 %s30, %s31
        %s424 = sadd.s32 %s30, %s31
        %p425 = scmp.eq.s32.totalorder %s32, 0
        // Predicated region
        $region33: #{tpu_custom_call.1} parent=31 // pred_check
          %p426 = pneg %p425
        $region34: #{tpu_custom_call.1} parent=31 // pred_check_branch
          %428 = sbr.rel (%p426) target = $region36
        $region35: #{tpu_custom_call.1} parent=31 // pred_region
          %429 = vst [vmem:[%s407] sm:$0xff] 0.0
          %430 = vst [vmem:[%s407 + $0x8] sm:$0xf] 0.0
          %431 = vst [vmem:[%s414] sm:$0xff] 0.0
          %432 = vst [vmem:[%s414 + $0x8] sm:$0xf] 0.0
          %433 = vst [vmem:[%s421] sm:$0xff] 0.0
          %434 = vst [vmem:[%s421 + $0x8] sm:$0xf] 0.0
          %435 = vst [vmem:[%s372] sm:$0x1] 0.0
          %436 = vst [vmem:[%s378] sm:$0x1] 0.0
        $region36: #{tpu_custom_call.1} parent=31 // pred_fallthru
          _
        %v437 = vld [vmem:[%s388] sm:$0xff]
        %v438 = vld [vmem:[%s388 + $0x8] sm:$0xff]
        %v439 = vld [vmem:[%s388 + $0x10] sm:$0xf]
        %v440 = vld [vmem:[%s388 + $0x18] sm:$0xf]
        %v441 = vld [vmem:[%s399] sm:$0x3]
        %v442 = vld [vmem:[%s0] sm:$0xff]
        %v443 = vld [vmem:[%s0 + $0x8] sm:$0xf]
        %s444 = sadd.s32 %s31, %s32
        %v445 = vlaneseq
        %v446 = vand.u32 %v445, 127
        %v447 = vadd.s32 %v446, 128
        %s448 = smul.u32 %s444, 256
        %v449 = vstv %s448
        %v450 = vadd.s32 %v449, %v446
        %v451 = vadd.s32 %v449, %v447
        %vm452 = vcmp.lt.s32.totalorder %v450, 256
        %vm453 = vcmp.lt.s32.totalorder %v451, 256
        %v454 = vlaneseq
        %v455 = vshrl.u32 %v454, 7
        %v456 = vsub.s32 0, %v455
        %v457 = vrot.slane %v441, %v456
        %v458 = vlaneseq
        %v459 = vshrl.u32 %v458, 7
        %v460 = vsub.s32 1, %v459
        %v461 = vrot.slane %v441, %v460
        %v462 = vsel %vm452, %v457, 4294967295
        %v463 = vsel %vm453, %v461, 4294967295
        %vm464 = vcmp.ge.s32.totalorder %v462, 0
        %vm465 = vcmp.ge.s32.totalorder %v463, 0
        %vm466 = vcmp.lt.s32.totalorder %v462, 12
        %vm467 = vcmp.lt.s32.totalorder %v463, 12
        %vm468 = vmand %vm464, %vm466
        %vm469 = vmand %vm465, %vm467
        %v470 = vsel %vm468, 1, 0
        %v471 = vsel %vm469, 1, 0
        %v472 = vcvt.s32.f32 %v470
        %v473 = vcvt.s32.f32 %v471
        %v474 = vsel %vm452, 1, 0
        %v475 = vsel %vm453, 1, 0
        %vm476 = vcmp.eq.s32.totalorder %v474, 1
        %vm477 = vcmp.eq.s32.totalorder %v475, 1
        %v478 = vsel %vm476, %v437, 0.0
        %v479 = vsel %vm477, %v438, 0.0
        %v480 = vsel %vm476, %v439, 0.0
        %v481 = vsel %vm477, %v440, 0.0
        %vm482 = vcmask 1043456
        %v483 = vsel %vm482, %v480, -inf
        %v484 = vmax.f32 %v478, %v483
        %v485 = vrot.slane %v484, 4
        %v486 = vmax.f32 %v484, %v485
        %v487 = vrot.slane %v486, 2
        %v488 = vmax.f32 %v486, %v487
        %v489 = vrot.slane %v488, 1
        %v490 = vmax.f32 %v488, %v489
        %v491 = vsel %vm482, %v481, -inf
        %v492 = vmax.f32 %v479, %v491
        %v493 = vrot.slane %v492, 4
        %v494 = vmax.f32 %v492, %v493
        %v495 = vrot.slane %v494, 2
        %v496 = vmax.f32 %v494, %v495
        %v497 = vrot.slane %v496, 1
        %v498 = vmax.f32 %v496, %v497
        %v499 = vsub.f32 %v478, %v490
        %v500 = vsub.f32 %v479, %v498
        %v501 = vsub.f32 %v480, %v490
        %v502 = vsub.f32 %v481, %v498
        %v503 = vmul.f32 %v499, 1.442695
        %v504 = vpow.pop %v503
        %v505 = vmul.f32 %v500, 1.442695
        %v506 = vpow.pop %v505
        %v507 = vmul.f32 %v501, 1.442695
        %v508 = vpow.pop %v507
        %v509 = vmul.f32 %v502, 1.442695
        %v510 = vpow.pop %v509
        %v511 = vsel %vm482, %v508, 0.0
        %v512 = vadd.f32 %v504, %v511
        %v513 = vrot.slane %v512, 4
        %v514 = vadd.f32 %v512, %v513
        %v515 = vrot.slane %v514, 2
        %v516 = vadd.f32 %v514, %v515
        %v517 = vrot.slane %v516, 1
        %v518 = vadd.f32 %v516, %v517
        %v519 = vsel %vm482, %v510, 0.0
        %v520 = vadd.f32 %v506, %v519
        %v521 = vrot.slane %v520, 4
        %v522 = vadd.f32 %v520, %v521
        %v523 = vrot.slane %v522, 2
        %v524 = vadd.f32 %v522, %v523
        %v525 = vrot.slane %v524, 1
        %v526 = vadd.f32 %v524, %v525
        %v527 = vlog2.pop %v518
        %v528 = vmul.f32 %v527, 0.6931472
        %v529 = vlog2.pop %v526
        %v530 = vmul.f32 %v529, 0.6931472
        %v531 = vlaneseq
        %v532 = vshrl.u32 %v531, 7
        %v533 = vadd.s32 %v532, 8
        %v534 = vlaneseq
        %v535 = vshrl.u32 %v534, 7
        %v536 = vsub.s32 0, %v535
        %v537 = vrot.slane %v462, %v536
        %v538 = vlaneseq
        %v539 = vshrl.u32 %v538, 7
        %v540 = vsub.s32 0, %v539
        %v541 = vrot.slane %v463, %v540
        %vm542 = vcmp.eq.s32.totalorder %v532, %v537
        %vm543 = vcmp.eq.s32.totalorder %v532, %v541
        %vm544 = vcmp.eq.s32.totalorder %v533, %v537
        %vm545 = vcmp.eq.s32.totalorder %v533, %v541
        %v546 = vsel %vm542, 1, 0
        %v547 = vsel %vm543, 1, 0
        %v548 = vsel %vm544, 1, 0
        %v549 = vsel %vm545, 1, 0
        %v550 = vcvt.s32.f32 %v546
        %v551 = vcvt.s32.f32 %v547
        %v552 = vcvt.s32.f32 %v548
        %v553 = vcvt.s32.f32 %v549
        %v554 = vrcp.pop %v518
        %v555 = vmul.f32 1.0, %v554
        %v556 = vrcp.pop %v526
        %v557 = vmul.f32 1.0, %v556
        %v558 = vmul.f32 %v555, %v472
        %v559 = vmul.f32 %v557, %v473
        %v560 = vlaneseq
        %v561 = vshrl.u32 %v560, 7
        %v562 = vsub.s32 0, %v561
        %v563 = vrot.slane %v558, %v562
        %v564 = vlaneseq
        %v565 = vshrl.u32 %v564, 7
        %v566 = vsub.s32 0, %v565
        %v567 = vrot.slane %v559, %v566
        %v568 = vmul.f32 %v504, %v563
        %v569 = vmul.f32 %v506, %v567
        %v570 = vmul.f32 %v508, %v563
        %v571 = vmul.f32 %v510, %v567
        %v572 = vmul.f32 %v550, %v499
        %v573 = vmul.f32 %v551, %v500
        %v574 = vmul.f32 %v552, %v501
        %v575 = vmul.f32 %v553, %v502
        %v576 = vsel %vm482, %v574, 0.0
        %v577 = vadd.f32 %v572, %v576
        %v578 = vrot.slane %v577, 4
        %v579 = vadd.f32 %v577, %v578
        %v580 = vrot.slane %v579, 2
        %v581 = vadd.f32 %v579, %v580
        %v582 = vrot.slane %v581, 1
        %v583 = vadd.f32 %v581, %v582
        %v584 = vsel %vm482, %v575, 0.0
        %v585 = vadd.f32 %v573, %v584
        %v586 = vrot.slane %v585, 4
        %v587 = vadd.f32 %v585, %v586
        %v588 = vrot.slane %v587, 2
        %v589 = vadd.f32 %v587, %v588
        %v590 = vrot.slane %v589, 1
        %v591 = vadd.f32 %v589, %v590
        %593 = vset.pattern.permute.xlu0 0
        %594 = vperm.xlu0 %593, %v442
        %v595 = vpop.permute.xlu0 %594
        %598 = vset.pattern.permute.xlu0 0
        %599 = vperm.xlu0 %598, %v443
        %v600 = vpop.permute.xlu0 %599
        %v602 = vmul.f32 %v550, %v595
        %v603 = vmul.f32 %v551, %v595
        %v604 = vmul.f32 %v552, %v600
        %v605 = vmul.f32 %v553, %v600
        %v606 = vsel %vm482, %v604, 0.0
        %v607 = vadd.f32 %v602, %v606
        %v608 = vrot.slane %v607, 4
        %v609 = vadd.f32 %v607, %v608
        %v610 = vrot.slane %v609, 2
        %v611 = vadd.f32 %v609, %v610
        %v612 = vrot.slane %v611, 1
        %v613 = vadd.f32 %v611, %v612
        %v614 = vsel %vm482, %v605, 0.0
        %v615 = vadd.f32 %v603, %v614
        %v616 = vrot.slane %v615, 4
        %v617 = vadd.f32 %v615, %v616
        %v618 = vrot.slane %v617, 2
        %v619 = vadd.f32 %v617, %v618
        %v620 = vrot.slane %v619, 1
        %v621 = vadd.f32 %v619, %v620
        %v622 = vsub.f32 %v528, %v583
        %v623 = vsub.f32 %v530, %v591
        %v624 = vadd.f32 %v550, %v551
        %v625 = vadd.f32 %v552, %v553
        %v626 = vld [vmem:[%s407] sm:$0xff]
        %v627 = vld [vmem:[%s407 + $0x8] sm:$0xf]
        %v628 = vmul.f32 %v550, %v568
        %v629 = vmul.f32 %v551, %v569
        %v630 = vmul.f32 %v552, %v570
        %v631 = vmul.f32 %v553, %v571
        %v632 = vadd.f32 %v628, %v629
        %v633 = vadd.f32 %v630, %v631
        %v634 = vadd.f32 %v626, %v632
        %v635 = vadd.f32 %v627, %v633
        %636 = vst [vmem:[%s407] sm:$0xff] %v634
        %637 = vst [vmem:[%s407 + $0x8] sm:$0xf] %v635
        %v638 = vld [vmem:[%s414] sm:$0xff]
        %v639 = vld [vmem:[%s414 + $0x8] sm:$0xf]
        %v640 = vadd.f32 %v568, %v569
        %v641 = vadd.f32 %v570, %v571
        %v642 = vadd.f32 %v640, %v624
        %v643 = vadd.f32 %v641, %v625
        %v644 = vadd.f32 %v638, %v642
        %v645 = vadd.f32 %v639, %v643
        %646 = vst [vmem:[%s414] sm:$0xff] %v644
        %647 = vst [vmem:[%s414 + $0x8] sm:$0xf] %v645
        %v648 = vld [vmem:[%s421] sm:$0xff]
        %v649 = vld [vmem:[%s421 + $0x8] sm:$0xf]
        %v650 = vadd.f32 %v648, %v624
        %v651 = vadd.f32 %v649, %v625
        %652 = vst [vmem:[%s421] sm:$0xff] %v650
        %653 = vst [vmem:[%s421 + $0x8] sm:$0xf] %v651
        %v654 = vld [vmem:[%s372] sm:$0x1]
        %v655 = vmul.f32 %v613, %v622
        %v656 = vmul.f32 %v621, %v623
        %v657 = vadd.f32 %v655, %v656
        %v658 = vadd.f32 %v654, %v657
        %659 = vst [vmem:[%s372] sm:$0x1] %v658
        %v660 = vld [vmem:[%s378] sm:$0x1]
        %v661 = vadd.f32 %v613, %v621
        %v662 = vadd.f32 %v660, %v661
        %663 = vst [vmem:[%s378] sm:$0x1] %v662
        %s664 = sadd.s32 %s30, %s31
        %p665 = scmp.lt.s32.totalorder %s664, 1
        %s666 = scalar_select %p665, %s664, 1
        %s667 = smul.addr %s666, 2
        %s668 = smul.addr %s667, 8
        %s669 = scalar_lea.vmem %s3, %s668
        %s670 = sadd.s32 %s30, %s31
        %p671 = scmp.lt.s32.totalorder %s670, 1
        %s672 = scalar_select %p671, %s670, 1
        %s673 = smul.addr %s672, 2
        %s674 = smul.addr %s673, 8
        %s675 = scalar_lea.vmem %s4, %s674
        %s676 = sadd.s32 %s30, %s31
        %p677 = scmp.lt.s32.totalorder %s676, 1
        %s678 = scalar_select %p677, %s676, 1
        %s679 = smul.addr %s678, 2
        %s680 = smul.addr %s679, 8
        %s681 = scalar_lea.vmem %s5, %s680
        %s682 = sand.u32 %s219, 1
        %s683 = scalar_lea.sflag [#allocation3], %s682
        %s684 = sand.u32 %s219, 1
        %s685 = scalar_lea.vmem [#allocation2], %s684
        %s686 = sand.u32 %s247, 1
        %s687 = scalar_lea.sflag [#allocation5], %s686
        %s688 = sand.u32 %s247, 1
        %s689 = scalar_lea.vmem [#allocation4], %s688
        // Predicated region
        $region37: #{tpu_custom_call.1} parent=31 // pred_check
          %p690 = pneg %p145
        $region38: #{tpu_custom_call.1} parent=31 // pred_check_branch
          %692 = sbr.rel (%p690) target = $region40
        $region39: #{tpu_custom_call.1} parent=31 // pred_region
          %s693 = sadd.s32 %s30, %s31
        $region40: #{tpu_custom_call.1} parent=31 // pred_fallthru
          _
        // Predicated region
        $region41: #{tpu_custom_call.1} parent=31 // pred_check
          %p694 = pneg %p173
        $region42: #{tpu_custom_call.1} parent=31 // pred_check_branch
          %696 = sbr.rel (%p694) target = $region44
        $region43: #{tpu_custom_call.1} parent=31 // pred_region
          %s697 = sadd.s32 %s30, %s31
        $region44: #{tpu_custom_call.1} parent=31 // pred_fallthru
          _
        // Predicated region
        $region45: #{tpu_custom_call.1} parent=31 // pred_check
          %p698 = pneg %p201
        $region46: #{tpu_custom_call.1} parent=31 // pred_check_branch
          %700 = sbr.rel (%p698) target = $region48
        $region47: #{tpu_custom_call.1} parent=31 // pred_region
          %s701 = sadd.s32 %s30, %s31
        $region48: #{tpu_custom_call.1} parent=31 // pred_fallthru
          _
        // Predicated region
        $region49: #{tpu_custom_call.1} parent=31 // pred_check
          %p702 = pneg %p229
        $region50: #{tpu_custom_call.1} parent=31 // pred_check_branch
          %704 = sbr.rel (%p702) target = $region52
        $region51: #{tpu_custom_call.1} parent=31 // pred_region
          %s705 = sadd.s32 %s30, %s31
          %s707 = ssub.s32 16, 16
          %708 = vsyncadd %s683, %s707
          %s709 = smul.addr %s705, 16
          %s710 = scalar_lea.hbm %s6, %s709
          %s712 = sshll.u32 %s685, 4
          %s713 = int_to_ptr.vmem [resolvable:$true] %s712
          %715 = dma.vmem_to_hbm [thread:$0]  %s713, 16, %s710, %s683
        $region52: #{tpu_custom_call.1} parent=31 // pred_fallthru
          _
        // Predicated region
        $region53: #{tpu_custom_call.1} parent=31 // pred_check
          %p716 = pneg %p257
        $region54: #{tpu_custom_call.1} parent=31 // pred_check_branch
          %718 = sbr.rel (%p716) target = $region56
        $region55: #{tpu_custom_call.1} parent=31 // pred_region
          %s719 = sadd.s32 %s30, %s31
          %s721 = ssub.s32 16, 16
          %722 = vsyncadd %s687, %s721
          %s723 = smul.addr %s719, 16
          %s724 = scalar_lea.hbm %s7, %s723
          %s726 = sshll.u32 %s689, 4
          %s727 = int_to_ptr.vmem [resolvable:$true] %s726
          %729 = dma.vmem_to_hbm [thread:$0]  %s727, 16, %s724, %s687
        $region56: #{tpu_custom_call.1} parent=31 // pred_fallthru
          _
      $region32: #{tpu_custom_call.1} parent=5 // pred_fallthru
        _
      %p730 = scmp.le.s32.totalorder 2, %s20
      // Predicated region
      $region57: #{tpu_custom_call.1} parent=5 // pred_check
        %p731 = pneg %p730
      $region58: #{tpu_custom_call.1} parent=5 // pred_check_branch
        %733 = sbr.rel (%p731) target = $region60
      $region59: #{tpu_custom_call.1} parent=5 // pred_region
        %s734 = ssub.s32 %s20, 2
        // Predicated region
        $region61: #{tpu_custom_call.1} parent=59 // pred_check
          %p735 = pneg %p151
        $region62: #{tpu_custom_call.1} parent=59 // pred_check_branch
          %737 = sbr.rel (%p735) target = $region64
        $region63: #{tpu_custom_call.1} parent=59 // pred_region
          %s738 = sadd.s32 %s33, %s34
          %p739 = scmp.lt.s32.totalorder %s738, 1
          %s740 = scalar_select %p739, %s738, 1
          %s741 = smul.addr %s740, 2
          %s742 = smul.addr %s741, 8
          %s743 = scalar_lea.vmem %s3, %s742
        $region64: #{tpu_custom_call.1} parent=59 // pred_fallthru
          _
        // Predicated region
        $region65: #{tpu_custom_call.1} parent=59 // pred_check
          %p744 = pneg %p179
        $region66: #{tpu_custom_call.1} parent=59 // pred_check_branch
          %746 = sbr.rel (%p744) target = $region68
        $region67: #{tpu_custom_call.1} parent=59 // pred_region
          %s747 = sadd.s32 %s33, %s34
          %p748 = scmp.lt.s32.totalorder %s747, 1
          %s749 = scalar_select %p748, %s747, 1
          %s750 = smul.addr %s749, 2
          %s751 = smul.addr %s750, 8
          %s752 = scalar_lea.vmem %s4, %s751
        $region68: #{tpu_custom_call.1} parent=59 // pred_fallthru
          _
        // Predicated region
        $region69: #{tpu_custom_call.1} parent=59 // pred_check
          %p753 = pneg %p207
        $region70: #{tpu_custom_call.1} parent=59 // pred_check_branch
          %755 = sbr.rel (%p753) target = $region72
        $region71: #{tpu_custom_call.1} parent=59 // pred_region
          %s756 = sadd.s32 %s33, %s34
          %p757 = scmp.lt.s32.totalorder %s756, 1
          %s758 = scalar_select %p757, %s756, 1
          %s759 = smul.addr %s758, 2
          %s760 = smul.addr %s759, 8
          %s761 = scalar_lea.vmem %s5, %s760
        $region72: #{tpu_custom_call.1} parent=59 // pred_fallthru
          _
        // Predicated region
        $region73: #{tpu_custom_call.1} parent=59 // pred_check
          %p762 = pneg %p235
        $region74: #{tpu_custom_call.1} parent=59 // pred_check_branch
          %764 = sbr.rel (%p762) target = $region76
        $region75: #{tpu_custom_call.1} parent=59 // pred_region
          %s765 = sand.u32 %s220, 1
          %s766 = scalar_lea.sflag [#allocation3], %s765
          %s767 = sand.u32 %s220, 1
          %s768 = scalar_lea.vmem [#allocation2], %s767
          %769 = dma.done %s766, 16
        $region76: #{tpu_custom_call.1} parent=59 // pred_fallthru
          _
        // Predicated region
        $region77: #{tpu_custom_call.1} parent=59 // pred_check
          %p770 = pneg %p263
        $region78: #{tpu_custom_call.1} parent=59 // pred_check_branch
          %772 = sbr.rel (%p770) target = $region80
        $region79: #{tpu_custom_call.1} parent=59 // pred_region
          %s773 = sand.u32 %s248, 1
          %s774 = scalar_lea.sflag [#allocation5], %s773
          %s775 = sand.u32 %s248, 1
          %s776 = scalar_lea.vmem [#allocation4], %s775
          %777 = dma.done %s774, 16
        $region80: #{tpu_custom_call.1} parent=59 // pred_fallthru
          _
      $region60: #{tpu_custom_call.1} parent=5 // pred_fallthru
        _
    $region6: #{tpu_custom_call.1} parent=1 // loop_footer
      %s24 = sadd.s32 1, %s20
    $region7: #{tpu_custom_call.1} parent=1 // loop_footer_branch
      %19 = sbr.rel target = $region3
    $region8: #{tpu_custom_call.1} parent=1 // loop_exit
      _
    %778 = vsyncpa [#allocation3], 1
    %s779 = scalar_lea.sflag [#allocation3], 1
    %780 = vsyncpa %s779, 1
    %781 = vsyncpa [#allocation5], 1
    %s782 = scalar_lea.sflag [#allocation5], 1
    %783 = vsyncpa %s782, 1

</llo_original>
